<compile_context>
chip_gen: v7x
topology: tpu7x:2x2x1
jax: 0.10.0
libtpu: 0.0.40
codegen_flags: <defaults>
</compile_context>

<pallas_src>
import jax
import jax.numpy as jnp
from jax.experimental import pallas as pl
from jax.experimental.pallas import tpu as pltpu


def _broadcast_add_kernel(c_ref, x_ref, o_ref):
    """o = x + broadcast(softmax_const) over the batch dim.

    c_ref: (rows, lanes)     precomputed softmax(const), lane-dense
    x_ref: (B, rows, lanes)
    o_ref: (B, rows, lanes)
    """
    o_ref[...] = (x_ref[...] + c_ref[...][None, :, :]).astype(o_ref.dtype)


def _broadcast_add(c2, x2):
    """c2: (rows, lanes), x2: (B, rows, lanes). Single whole-array VMEM block."""
    vmem = pl.BlockSpec(memory_space=pltpu.MemorySpace.VMEM)
    itemsize = jnp.dtype(x2.dtype).itemsize
    bytes_accessed = (x2.size + c2.size + x2.size) * itemsize
    return pl.pallas_call(
        _broadcast_add_kernel,
        out_shape=jax.ShapeDtypeStruct(x2.shape, x2.dtype),
        in_specs=[vmem, vmem],
        out_specs=vmem,
        input_output_aliases={1: 0},  # donate x's buffer to the output
        cost_estimate=pl.CostEstimate(
            flops=x2.size, transcendentals=0, bytes_accessed=bytes_accessed),
    )(c2, x2)


def model_const_eval_pass_forward(x, c, dim=-1):
    """Equivalent of ModelConstEvalPass(shape, dim).forward(x):
        v1 = softmax(c, dim);  v2 = x + v1
    `c` has the microbatch dim reduced to 1 and broadcasts over x's batch dim.
    softmax(c) is hoisted out of the kernel (c is a fixed constant -> const-eval);
    the Pallas kernel is a pure memory-bound broadcast add.
    """
    # Exact softmax on the constant, in f32 (keeps the transcendental path in f32,
    # which also matters on v5e where there is no bf16 VPU/EUP).
    sm = jax.nn.softmax(c.astype(jnp.float32), axis=dim).astype(x.dtype)

    B = x.shape[0]
    n = 1
    for s in x.shape[1:]:
        n *= s

    # Lane-dense packing: view the non-batch dims as (rows, 128) when possible so the
    # kernel's single store is a full-width unmasked vst.
    if n % 128 == 0:
        rows, lanes = n // 128, 128
    else:
        rows, lanes = 1, n  # TODO(synk): pad to a 128-lane multiple for odd widths

    x2 = x.reshape(B, rows, lanes)
    c2 = sm.reshape(rows, lanes)  # constant has leading microbatch dim of size 1

    out2 = _broadcast_add(c2, x2)
    return out2.reshape(x.shape)


if __name__ == "__main__":
    # Small shape consistent with the module's generic "shape" + dim=-1 usage.
    B, C, H, W = 2, 4, 8, 32
    dim = -1

    key = jax.random.PRNGKey(0)
    kx, kc = jax.random.split(key)
    x = jax.random.normal(kx, (B, C, H, W), dtype=jnp.float32)
    # self.c = (torch.rand(*reduce_microbatch_size(shape)) - 0.5)  ->  U[-0.5, 0.5)
    c = jax.random.uniform(kc, (1, C, H, W), dtype=jnp.float32, minval=-0.5, maxval=0.5)

    out = jax.block_until_ready(model_const_eval_pass_forward(x, c, dim=dim))

    # Reference: plain-JAX forward of the same module.
    ref = x + jax.nn.softmax(c, axis=dim)
    assert out.shape == x.shape
    assert jnp.allclose(out, ref, atol=1e-6, rtol=1e-6), float(jnp.max(jnp.abs(out - ref)))

    print("KERNEL_OK")
</pallas_src>

<mosaic_0001>
module attributes {stable_mosaic.version = 11 : i64} {
  func.func @_broadcast_add_kernel(%arg0: memref<8x128xf32, #tpu.memory_space<vmem>>, %arg1: memref<2x8x128xf32, #tpu.memory_space<vmem>>, %arg2: memref<2x8x128xf32, #tpu.memory_space<vmem>>) attributes {dimension_semantics = [], scalar_prefetch = 0 : i64, scratch_operands = 0 : i64, tpu.core_type = #tpu.core_type<tc>} {
    %c0 = arith.constant 0 : index
    %c0_0 = arith.constant 0 : index
    %c0_1 = arith.constant 0 : index
    %0 = vector.load %arg1[%c0, %c0_0, %c0_1] : memref<2x8x128xf32, #tpu.memory_space<vmem>>, vector<2x8x128xf32>
    %c0_2 = arith.constant 0 : index
    %c0_3 = arith.constant 0 : index
    %1 = vector.load %arg0[%c0_2, %c0_3] : memref<8x128xf32, #tpu.memory_space<vmem>>, vector<8x128xf32>
    %2 = vector.shape_cast %1 : vector<8x128xf32> to vector<1x8x128xf32>
    %3 = vector.broadcast %2 : vector<1x8x128xf32> to vector<2x8x128xf32>
    %4 = arith.addf %0, %3 : vector<2x8x128xf32>
    %c0_4 = arith.constant 0 : index
    %c0_5 = arith.constant 0 : index
    %c0_6 = arith.constant 0 : index
    %5 = vector.load %arg2[%c0_4, %c0_5, %c0_6] : memref<2x8x128xf32, #tpu.memory_space<vmem>>, vector<2x8x128xf32>
    tpu.vector_store %arg2[%c0_4, %c0_5, %c0_6], %4 {strides = array<i32>} : memref<2x8x128xf32, #tpu.memory_space<vmem>>, vector<2x8x128xf32>,
    return
  }
}

</mosaic_0001>

<llo_original>
// kernel: tpu_custom_call.1
$region0: #{tpu_custom_call.1}
  #allocation0 [shape = 'u32[]', space=smem, size = 0x4, offset = 0x4, fixed_abs, tag = 'smem constant byte address 0x4 - core index']
  #allocation1 [shape = 'u32[144,128]{1,0:T(1,128)}', space=vmem, size = 0x12000, scoped, tag = 'internal scratch']
  %s0 = inlined_call_operand.vmem [shape: f32[8,128], index: 0, kind: input, shape index: {}]
  %s1 = inlined_call_operand.hbm [shape: f32[2,8,128], index: 1, kind: input, shape index: {}, may-alias: {1,2}]
  %s2 = inlined_call_operand.hbm [shape: f32[2,8,128], index: 2, kind: output, shape index: {}, may-alias: {1,2}]
  %s3 = sld [smem:[#allocation0]]
  $region22: #{tpu_custom_call.1} parent=0
    _
  %s5 = ssub.s32 1, %s3
  %s6 = scalar_select 0, %s5, %s3
  $region1: #{tpu_custom_call.1} parent=0
    #allocation2 [shape = 'u8[8192]{0}', space=vmem, size = 0x2000, scoped, tag = 'input window, operand 1, single buffered']
    #allocation3 [shape = 's32[1]{0}', space=sflag, size = 0x4, scoped, tag = 'scoped memory for tpu_custom_call.1']
    #allocation4 [shape = 's32[1]{0}', space=sflag, size = 0x4, scoped, tag = 'scoped memory for tpu_custom_call.1']
    #allocation5 [shape = 'u8[8192]{0}', space=vmem, size = 0x2000, scoped, tag = 'output window, operand 0, single buffered']
    %7 = vsyncpa [#allocation3], 0
    %8 = vsyncpa [#allocation4], 0
    // Predicated region
    $region2: #{tpu_custom_call.1} parent=1 // pred_check
      _
    $region3: #{tpu_custom_call.1} parent=1 // pred_check_branch
      %10 = sbr.rel (0) target = $region5
    $region4: #{tpu_custom_call.1} parent=1 // pred_region
      _
    $region5: #{tpu_custom_call.1} parent=1 // pred_fallthru
      _
    // Predicated region
    $region6: #{tpu_custom_call.1} parent=1 // pred_check
      _
    $region7: #{tpu_custom_call.1} parent=1 // pred_check_branch
      %12 = sbr.rel (0) target = $region9
    $region8: #{tpu_custom_call.1} parent=1 // pred_region
      %s14 = ssub.s32 256, 256
      %15 = vsyncadd [#allocation3], %s14
      %s16 = sshll.u32 [#allocation2], 4
      %s17 = int_to_ptr.vmem [resolvable:$true] %s16
      %22 = dma.hbm_to_vmem [thread:$0]  %s1, 256, %s17, [#allocation3], 128, 128, 8
    $region9: #{tpu_custom_call.1} parent=1 // pred_fallthru
      _
    // Predicated region
    $region10: #{tpu_custom_call.1} parent=1 // pred_check
      _
    $region11: #{tpu_custom_call.1} parent=1 // pred_check_branch
      %24 = sbr.rel (0) target = $region13
    $region12: #{tpu_custom_call.1} parent=1 // pred_region
      %25 = dma.done [#allocation3], 256
    $region13: #{tpu_custom_call.1} parent=1 // pred_fallthru
      _
    %v26 = vld [vmem:[#allocation2] sm:$0xff]
    %v27 = vld [vmem:[#allocation2 + $0x8] sm:$0xff]
    %v28 = vld [vmem:[%s0] sm:$0xff]
    %v29 = vadd.f32 %v26, %v28
    %v30 = vadd.f32 %v27, %v28
    %31 = vst [vmem:[#allocation5] sm:$0xff] %v29
    %32 = vst [vmem:[#allocation5 + $0x8] sm:$0xff] %v30
    // Predicated region
    $region14: #{tpu_custom_call.1} parent=1 // pred_check
      _
    $region15: #{tpu_custom_call.1} parent=1 // pred_check_branch
      %34 = sbr.rel (0) target = $region17
    $region16: #{tpu_custom_call.1} parent=1 // pred_region
      %s36 = ssub.s32 256, 256
      %37 = vsyncadd [#allocation4], %s36
      %s38 = sshll.u32 [#allocation5], 4
      %s39 = int_to_ptr.vmem [resolvable:$true] %s38
      %44 = dma.vmem_to_hbm [thread:$0]  %s39, 256, %s2, [#allocation4], 128, 128, 8
    $region17: #{tpu_custom_call.1} parent=1 // pred_fallthru
      _
    // Predicated region
    $region18: #{tpu_custom_call.1} parent=1 // pred_check
      _
    $region19: #{tpu_custom_call.1} parent=1 // pred_check_branch
      %46 = sbr.rel (0) target = $region21
    $region20: #{tpu_custom_call.1} parent=1 // pred_region
      %47 = dma.done [#allocation4], 256
    $region21: #{tpu_custom_call.1} parent=1 // pred_fallthru
      _
    %48 = vsyncpa [#allocation3], 1
    %49 = vsyncpa [#allocation4], 1

</llo_original>
